<compile_context>
chip_gen: v7x
topology: tpu7x:2x2x1
jax: 0.10.0
libtpu: 0.0.40
codegen_flags: <defaults>
</compile_context>

<pallas_src>
import jax
import jax.numpy as jnp
from jax.experimental import pallas as pl
from jax.experimental.pallas import tpu as pltpu


def value_net_kernel(x_ref, w1_ref, b1_ref, w2_ref, b2_ref, w3_ref, b3_ref, out_ref):
    # fc1 + relu  (bf16 MXU inputs, f32 accumulation)
    x = x_ref[...].astype(jnp.bfloat16)
    h1 = jnp.dot(x, w1_ref[...], preferred_element_type=jnp.float32)
    h1 = jnp.maximum(h1 + b1_ref[...], 0.0)

    # fc2 + relu
    h2 = jnp.dot(h1.astype(jnp.bfloat16), w2_ref[...],
                 preferred_element_type=jnp.float32)
    h2 = jnp.maximum(h2 + b2_ref[...], 0.0)

    # v head (fc2 -> 1) as a lane reduction instead of an N=1 MXU matmul.
    # w3 is stored as a (1, fc2) row; b3 is a scalar in SMEM.
    w3_row = w3_ref[...].astype(jnp.float32)
    v = jnp.sum(h2 * w3_row, axis=-1, keepdims=True) + b3_ref[0]
    out_ref[...] = v.astype(out_ref.dtype)


def _round_up(x, m):
    return ((x + m - 1) // m) * m


def value_network_forward(state, params, *, block_b=256):
    """state: (B, input_dim) float32. params: dict of kernel-layout weights."""
    w1, b1, w2, b2, w3, b3 = (
        params["w1"], params["b1"], params["w2"],
        params["b2"], params["w3"], params["b3"],
    )
    B, D = state.shape
    F1 = w1.shape[1]
    F2 = w2.shape[1]

    # Batch tile: large enough to fill MXU rows, multiple of 8 sublanes.
    TB = block_b if B >= block_b else _round_up(B, 8)
    Bp = _round_up(B, TB)
    if Bp != B:
        state = jnp.pad(state, ((0, Bp - B), (0, 0)))
    nb = Bp // TB

    out = pl.pallas_call(
        value_net_kernel,
        out_shape=jax.ShapeDtypeStruct((Bp, 1), jnp.float32),
        grid=(nb,),
        in_specs=[
            # state / output tiles stream over the batch grid axis
            pl.BlockSpec((TB, D), lambda i: (i, 0)),
            # weights & biases: constant index_map -> stay resident in VMEM
            pl.BlockSpec((D, F1), lambda i: (0, 0)),
            pl.BlockSpec((1, F1), lambda i: (0, 0)),
            pl.BlockSpec((F1, F2), lambda i: (0, 0)),
            pl.BlockSpec((1, F2), lambda i: (0, 0)),
            pl.BlockSpec((1, F2), lambda i: (0, 0)),
            # scalar head bias: SMEM, no padded VMEM tile
            pl.BlockSpec(memory_space=pltpu.MemorySpace.SMEM),
        ],
        out_specs=pl.BlockSpec((TB, 1), lambda i: (i, 0)),
        compiler_params=pltpu.CompilerParams(
            dimension_semantics=("parallel",),   # batch tiles are independent
            vmem_limit_bytes=32 * 1024 * 1024,   # safe on v5e/v6e/v7x
        ),
    )(state, w1, b1, w2, b2, w3, b3)

    return out[:B]


def init_params(key, input_dim, fc1_dims=256, fc2_dims=256):
    """Deterministic init mimicking nn.Linear's U(-1/sqrt(fan_in), 1/sqrt(fan_in)).
    Weights are stored transposed as (in, out); matmul weights in bf16;
    the head weight as a (1, fc2) bf16 row; biases in f32 (b3 is a scalar)."""
    keys = jax.random.split(key, 6)

    def linear(kw, kb, fan_in, fan_out):
        bound = 1.0 / (fan_in ** 0.5)
        w = jax.random.uniform(kw, (fan_in, fan_out), jnp.float32, -bound, bound)
        b = jax.random.uniform(kb, (fan_out,), jnp.float32, -bound, bound)
        return w, b

    w1, b1 = linear(keys[0], keys[1], input_dim, fc1_dims)
    w2, b2 = linear(keys[2], keys[3], fc1_dims, fc2_dims)
    w3, b3 = linear(keys[4], keys[5], fc2_dims, 1)

    return {
        "w1": w1.astype(jnp.bfloat16),
        "b1": b1.reshape(1, fc1_dims),
        "w2": w2.astype(jnp.bfloat16),
        "b2": b2.reshape(1, fc2_dims),
        "w3": w3.reshape(1, fc2_dims).astype(jnp.bfloat16),  # (fc2,1) -> (1,fc2) row
        "b3": b3,                                            # shape (1,) f32, SMEM
    }


def reference_forward_kernel_math(state, p):
    """JAX reference doing exactly what the kernel does (bf16 MXU inputs)."""
    h1 = jnp.dot(state.astype(jnp.bfloat16), p["w1"],
                 preferred_element_type=jnp.float32) + p["b1"]
    h1 = jnp.maximum(h1, 0.0)
    h2 = jnp.dot(h1.astype(jnp.bfloat16), p["w2"],
                 preferred_element_type=jnp.float32) + p["b2"]
    h2 = jnp.maximum(h2, 0.0)
    return jnp.sum(h2 * p["w3"].astype(jnp.float32), axis=-1, keepdims=True) + p["b3"]


def reference_forward_f32(state, p):
    """Full-precision reference (matches the PyTorch f32 module semantics)."""
    w1 = p["w1"].astype(jnp.float32)
    w2 = p["w2"].astype(jnp.float32)
    w3 = p["w3"].astype(jnp.float32)
    h1 = jnp.maximum(state @ w1 + p["b1"], 0.0)
    h2 = jnp.maximum(h1 @ w2 + p["b2"], 0.0)
    return h2 @ w3.T + p["b3"]


if __name__ == "__main__":
    key = jax.random.PRNGKey(0)
    k_param, k_state = jax.random.split(key)

    batch = 512              # tiled as 2 grid steps of TB=256
    input_dim = 16           # corresponds to input_dims=(16,) in the PyTorch module
    fc1_dims = fc2_dims = 256

    params = init_params(k_param, input_dim, fc1_dims, fc2_dims)
    state = jax.random.normal(k_state, (batch, input_dim), jnp.float32)

    v = value_network_forward(state, params, block_b=256)
    jax.block_until_ready(v)

    assert v.shape == (batch, 1), v.shape

    # Exact-math check against a JAX reference doing the same bf16 matmuls.
    v_match = reference_forward_kernel_math(state, params)
    assert jnp.allclose(v, v_match, atol=2e-3, rtol=2e-3), \
        "mismatch vs bf16-matched JAX reference"

    # Loose check against the full-f32 reference (bf16 weight drift expected).
    v_f32 = reference_forward_f32(state, params)
    assert jnp.allclose(v, v_f32, atol=5e-2, rtol=5e-2), \
        "mismatch vs f32 JAX reference"

    print("KERNEL_OK")
</pallas_src>

<mosaic_0001>
module attributes {stable_mosaic.version = 11 : i64} {
  func.func @value_net_kernel(%arg0: i32, %arg1: memref<256x16xf32, #tpu.memory_space<vmem>>, %arg2: memref<16x256xbf16, #tpu.memory_space<vmem>>, %arg3: memref<1x256xf32, #tpu.memory_space<vmem>>, %arg4: memref<256x256xbf16, #tpu.memory_space<vmem>>, %arg5: memref<1x256xf32, #tpu.memory_space<vmem>>, %arg6: memref<1x256xbf16, #tpu.memory_space<vmem>>, %arg7: memref<1xf32, #tpu.memory_space<smem>>, %arg8: memref<256x1xf32, #tpu.memory_space<vmem>>) attributes {dimension_semantics = [#tpu.dimension_semantics<parallel>], iteration_bounds = array<i64: 2>, scalar_prefetch = 0 : i64, scratch_operands = 0 : i64, tpu.core_type = #tpu.core_type<tc>, window_params = [{transform_indices = @transform_0, window_bounds = array<i64: 256, 16>}, {pipeline_mode = #tpu.pipeline_mode<synchronous>, transform_indices = @transform_1, window_bounds = array<i64: 16, 256>}, {pipeline_mode = #tpu.pipeline_mode<synchronous>, transform_indices = @transform_2, window_bounds = array<i64: 1, 256>}, {pipeline_mode = #tpu.pipeline_mode<synchronous>, transform_indices = @transform_3, window_bounds = array<i64: 256, 256>}, {pipeline_mode = #tpu.pipeline_mode<synchronous>, transform_indices = @transform_4, window_bounds = array<i64: 1, 256>}, {pipeline_mode = #tpu.pipeline_mode<synchronous>, transform_indices = @transform_5, window_bounds = array<i64: 1, 256>}, {transform_indices = @transform_6, window_bounds = array<i64: 1>}, {transform_indices = @transform_7, window_bounds = array<i64: 256, 1>}]} {
    %c0 = arith.constant 0 : index
    %c0_0 = arith.constant 0 : index
    %0 = vector.load %arg1[%c0, %c0_0] : memref<256x16xf32, #tpu.memory_space<vmem>>, vector<256x16xf32>
    %1 = arith.truncf %0 : vector<256x16xf32> to vector<256x16xbf16>
    %c0_1 = arith.constant 0 : index
    %c0_2 = arith.constant 0 : index
    %2 = vector.load %arg2[%c0_1, %c0_2] : memref<16x256xbf16, #tpu.memory_space<vmem>>, vector<16x256xbf16>
    %cst = arith.constant dense<0.000000e+00> : vector<256x256xf32>
    %3 = tpu.matmul %1, %2, %cst {dimension_numbers = #tpu.dot_dimension_numbers<[1], [0], [0], [1], [0, 0, 1, 1], [], []>} : vector<256x16xbf16>, vector<16x256xbf16>, vector<256x256xf32> -> vector<256x256xf32>
    %c0_3 = arith.constant 0 : index
    %c0_4 = arith.constant 0 : index
    %4 = vector.load %arg3[%c0_3, %c0_4] : memref<1x256xf32, #tpu.memory_space<vmem>>, vector<1x256xf32>
    %5 = vector.broadcast %4 : vector<1x256xf32> to vector<256x256xf32>
    %6 = arith.addf %3, %5 : vector<256x256xf32>
    %cst_5 = arith.constant 0.000000e+00 : f32
    %7 = vector.broadcast %cst_5 : f32 to vector<256x256xf32>
    %8 = arith.maximumf %6, %7 : vector<256x256xf32>
    %9 = arith.truncf %8 : vector<256x256xf32> to vector<256x256xbf16>
    %c0_6 = arith.constant 0 : index
    %c0_7 = arith.constant 0 : index
    %10 = vector.load %arg4[%c0_6, %c0_7] : memref<256x256xbf16, #tpu.memory_space<vmem>>, vector<256x256xbf16>
    %cst_8 = arith.constant dense<0.000000e+00> : vector<256x256xf32>
    %11 = tpu.matmul %9, %10, %cst_8 {dimension_numbers = #tpu.dot_dimension_numbers<[1], [0], [0], [1], [0, 0, 1, 1], [], []>} : vector<256x256xbf16>, vector<256x256xbf16>, vector<256x256xf32> -> vector<256x256xf32>
    %c0_9 = arith.constant 0 : index
    %c0_10 = arith.constant 0 : index
    %12 = vector.load %arg5[%c0_9, %c0_10] : memref<1x256xf32, #tpu.memory_space<vmem>>, vector<1x256xf32>
    %13 = vector.broadcast %12 : vector<1x256xf32> to vector<256x256xf32>
    %14 = arith.addf %11, %13 : vector<256x256xf32>
    %cst_11 = arith.constant 0.000000e+00 : f32
    %15 = vector.broadcast %cst_11 : f32 to vector<256x256xf32>
    %16 = arith.maximumf %14, %15 : vector<256x256xf32>
    %c0_12 = arith.constant 0 : index
    %c0_13 = arith.constant 0 : index
    %17 = vector.load %arg6[%c0_12, %c0_13] : memref<1x256xbf16, #tpu.memory_space<vmem>>, vector<1x256xbf16>
    %18 = arith.extf %17 : vector<1x256xbf16> to vector<1x256xf32>
    %19 = vector.broadcast %18 : vector<1x256xf32> to vector<256x256xf32>
    %20 = arith.mulf %16, %19 : vector<256x256xf32>
    %cst_14 = arith.constant dense<0.000000e+00> : vector<256xf32>
    %21 = vector.multi_reduction <add>, %20, %cst_14 [1] : vector<256x256xf32> to vector<256xf32>
    %22 = vector.shape_cast %21 : vector<256xf32> to vector<256x1xf32>
    %c0_15 = arith.constant 0 : index
    %23 = memref.load %arg7[%c0_15] : memref<1xf32, #tpu.memory_space<smem>>
    %24 = vector.broadcast %23 : f32 to vector<256x1xf32>
    %25 = arith.addf %22, %24 : vector<256x1xf32>
    %c0_16 = arith.constant 0 : index
    %c0_17 = arith.constant 0 : index
    %26 = vector.load %arg8[%c0_16, %c0_17] : memref<256x1xf32, #tpu.memory_space<vmem>>, vector<256x1xf32>
    tpu.vector_store %arg8[%c0_16, %c0_17], %25 {strides = array<i32>} : memref<256x1xf32, #tpu.memory_space<vmem>>, vector<256x1xf32>,
    return
  }
  func.func @transform_0(%arg0: i32) -> (i32, i32) {
    %c0_i32 = arith.constant 0 : i32
    %c0_i32_0 = arith.constant 0 : i32
    return %arg0, %c0_i32 : i32, i32
  }
  func.func @transform_1(%arg0: i32) -> (i32, i32) {
    %c0_i32 = arith.constant 0 : i32
    %c0_i32_0 = arith.constant 0 : i32
    %c0_i32_1 = arith.constant 0 : i32
    return %c0_i32, %c0_i32_0 : i32, i32
  }
  func.func @transform_2(%arg0: i32) -> (i32, i32) {
    %c0_i32 = arith.constant 0 : i32
    %c0_i32_0 = arith.constant 0 : i32
    %c0_i32_1 = arith.constant 0 : i32
    return %c0_i32, %c0_i32_0 : i32, i32
  }
  func.func @transform_3(%arg0: i32) -> (i32, i32) {
    %c0_i32 = arith.constant 0 : i32
    %c0_i32_0 = arith.constant 0 : i32
    %c0_i32_1 = arith.constant 0 : i32
    return %c0_i32, %c0_i32_0 : i32, i32
  }
  func.func @transform_4(%arg0: i32) -> (i32, i32) {
    %c0_i32 = arith.constant 0 : i32
    %c0_i32_0 = arith.constant 0 : i32
    %c0_i32_1 = arith.constant 0 : i32
    return %c0_i32, %c0_i32_0 : i32, i32
  }
  func.func @transform_5(%arg0: i32) -> (i32, i32) {
    %c0_i32 = arith.constant 0 : i32
    %c0_i32_0 = arith.constant 0 : i32
    %c0_i32_1 = arith.constant 0 : i32
    return %c0_i32, %c0_i32_0 : i32, i32
  }
  func.func @transform_6(%arg0: i32) -> i32 {
    %c0_i32 = arith.constant 0 : i32
    %c0_i32_0 = arith.constant 0 : i32
    return %c0_i32 : i32
  }
  func.func @transform_7(%arg0: i32) -> (i32, i32) {
    %c0_i32 = arith.constant 0 : i32
    %c0_i32_0 = arith.constant 0 : i32
    return %arg0, %c0_i32 : i32, i32
  }
}

</mosaic_0001>

<llo_original>
// kernel: tpu_custom_call.1
$region0: #{tpu_custom_call.1}
  #allocation0 [shape = 'u32[]', space=smem, size = 0x4, offset = 0x4, fixed_abs, tag = 'smem constant byte address 0x4 - core index']
  #allocation1 [shape = 'u32[144,128]{1,0:T(1,128)}', space=vmem, size = 0x12000, scoped, tag = 'internal scratch']
  #allocation2 [shape = 'f32[1]{0:T(128)S(6)}', space=smem, size = 0x200, scoped, tag = 'scoped memory for tpu_custom_call.1']
  %s0 = inlined_call_operand.vmem [shape: f32[512,16], index: 0, kind: input, shape index: {}]
  %s1 = inlined_call_operand.vmem [shape: bf16[16,256], index: 1, kind: input, shape index: {}]
  %s2 = inlined_call_operand.vmem [shape: f32[1,256], index: 2, kind: input, shape index: {}]
  %s3 = inlined_call_operand.vmem [shape: bf16[256,256], index: 3, kind: input, shape index: {}]
  %s4 = inlined_call_operand.vmem [shape: f32[1,256], index: 4, kind: input, shape index: {}]
  %s5 = inlined_call_operand.vmem [shape: bf16[1,256], index: 5, kind: input, shape index: {}]
  %s6 = inlined_call_operand.<no memory space> [shape: f32[1], index: 6, kind: input, shape index: {}]
  %s7 = inlined_call_operand.vmem [shape: f32[512,1], index: 7, kind: output, shape index: {}]
  %s8 = sld [smem:[#allocation0]]
  $region61: #{tpu_custom_call.1} parent=0
    _
  %s10 = ssub.s32 1, %s8
  %s11 = scalar_select 0, %s10, %s8
  %12 = sst [smem:[#allocation2]] %s6
  loop: start=0, step=1, limit=4
  $region2: #{tpu_custom_call.1} parent=0 // loop_pre_header
    _
  $region3: #{tpu_custom_call.1} parent=0 // loop_header
    %s14 = sphi 0, %s18
    %p15 = scmp.ge.s32.totalorder %s14, 4
    %s24 = sphi 0, %s26
    %s27 = sphi 0, %s24
    %s28 = sphi 0, %s27
    %s44 = sphi 0, %s28
    %s48 = sphi 0, %s48
    %s50 = sphi 0, %s48
    %s51 = sphi 0, %s50
    %s65 = sphi 0, %s51
    %s69 = sphi 0, %s69
    %s71 = sphi 0, %s69
    %s72 = sphi 0, %s71
    %s86 = sphi 0, %s72
    %s90 = sphi 0, %s90
    %s92 = sphi 0, %s90
    %s93 = sphi 0, %s92
    %s107 = sphi 0, %s93
    %s111 = sphi 0, %s111
    %s113 = sphi 0, %s111
    %s114 = sphi 0, %s113
    %s128 = sphi 0, %s114
    %s132 = sphi 0, %s132
    %s134 = sphi 0, %s132
    %s135 = sphi 0, %s134
    %s149 = sphi 0, %s135
    %s153 = sphi 0, %s153
    %s155 = sphi 0, %s153
    %s156 = sphi 0, %s155
    %s170 = sphi 0, %s156
    %s176 = sphi 0, %s178
    %s179 = sphi 0, %s176
    %s180 = sphi 0, %s179
    %s196 = sphi 0, %s180
  $region4: #{tpu_custom_call.1} parent=0 // loop_header_branch
    %17 = sbr.rel (%p15) target = $region8
  $region5: #{tpu_custom_call.1} parent=0 // loop_body
    %s19 = ssub.s32 %s14, 1
    %s20 = ssub.s32 %s14, 2
    %s21 = sadd.s32 %s14, 1
    %s22 = ssub.s32 %s14, %s21
    %p23 = scmp.eq.s32.totalorder %s22, 0
    %s25 = sadd.s32 %s24, 1
    %s26 = scalar_select %p23, %s24, %s25
    %p29 = pneg %p23
    %p30 = scmp.eq.s32.totalorder %s14, 1
    %p31 = por %p29, %p30
    %p32 = scmp.ne.s32.totalorder %s24, %s27
    %p33 = scmp.eq.s32.totalorder %s14, 0
    %p34 = por %p32, %p33
    %p35 = scmp.ne.s32.totalorder %s24, %s27
    %p36 = scmp.eq.s32.totalorder %s19, 1
    %p37 = por %p35, %p36
    %p38 = scmp.ne.s32.totalorder %s27, %s28
    %p39 = scmp.eq.s32.totalorder %s19, 0
    %p40 = por %p38, %p39
    %p41 = scmp.ne.s32.totalorder %s27, %s28
    %p42 = scmp.eq.s32.totalorder %s20, 1
    %p43 = por %p41, %p42
    %p45 = scmp.ne.s32.totalorder %s28, %s44
    %p46 = scmp.eq.s32.totalorder %s20, 0
    %p47 = por %p45, %p46
    %s49 = sadd.s32 %s48, 1
    %p52 = scmp.eq.s32.totalorder %s14, 1
    %p53 = scmp.ne.s32.totalorder %s48, %s50
    %p54 = scmp.eq.s32.totalorder %s14, 0
    %p55 = por %p53, %p54
    %p56 = scmp.ne.s32.totalorder %s48, %s50
    %p57 = scmp.eq.s32.totalorder %s19, 1
    %p58 = por %p56, %p57
    %p59 = scmp.ne.s32.totalorder %s50, %s51
    %p60 = scmp.eq.s32.totalorder %s19, 0
    %p61 = por %p59, %p60
    %p62 = scmp.ne.s32.totalorder %s50, %s51
    %p63 = scmp.eq.s32.totalorder %s20, 1
    %p64 = por %p62, %p63
    %p66 = scmp.ne.s32.totalorder %s51, %s65
    %p67 = scmp.eq.s32.totalorder %s20, 0
    %p68 = por %p66, %p67
    %s70 = sadd.s32 %s69, 1
    %p73 = scmp.eq.s32.totalorder %s14, 1
    %p74 = scmp.ne.s32.totalorder %s69, %s71
    %p75 = scmp.eq.s32.totalorder %s14, 0
    %p76 = por %p74, %p75
    %p77 = scmp.ne.s32.totalorder %s69, %s71
    %p78 = scmp.eq.s32.totalorder %s19, 1
    %p79 = por %p77, %p78
    %p80 = scmp.ne.s32.totalorder %s71, %s72
    %p81 = scmp.eq.s32.totalorder %s19, 0
    %p82 = por %p80, %p81
    %p83 = scmp.ne.s32.totalorder %s71, %s72
    %p84 = scmp.eq.s32.totalorder %s20, 1
    %p85 = por %p83, %p84
    %p87 = scmp.ne.s32.totalorder %s72, %s86
    %p88 = scmp.eq.s32.totalorder %s20, 0
    %p89 = por %p87, %p88
    %s91 = sadd.s32 %s90, 1
    %p94 = scmp.eq.s32.totalorder %s14, 1
    %p95 = scmp.ne.s32.totalorder %s90, %s92
    %p96 = scmp.eq.s32.totalorder %s14, 0
    %p97 = por %p95, %p96
    %p98 = scmp.ne.s32.totalorder %s90, %s92
    %p99 = scmp.eq.s32.totalorder %s19, 1
    %p100 = por %p98, %p99
    %p101 = scmp.ne.s32.totalorder %s92, %s93
    %p102 = scmp.eq.s32.totalorder %s19, 0
    %p103 = por %p101, %p102
    %p104 = scmp.ne.s32.totalorder %s92, %s93
    %p105 = scmp.eq.s32.totalorder %s20, 1
    %p106 = por %p104, %p105
    %p108 = scmp.ne.s32.totalorder %s93, %s107
    %p109 = scmp.eq.s32.totalorder %s20, 0
    %p110 = por %p108, %p109
    %s112 = sadd.s32 %s111, 1
    %p115 = scmp.eq.s32.totalorder %s14, 1
    %p116 = scmp.ne.s32.totalorder %s111, %s113
    %p117 = scmp.eq.s32.totalorder %s14, 0
    %p118 = por %p116, %p117
    %p119 = scmp.ne.s32.totalorder %s111, %s113
    %p120 = scmp.eq.s32.totalorder %s19, 1
    %p121 = por %p119, %p120
    %p122 = scmp.ne.s32.totalorder %s113, %s114
    %p123 = scmp.eq.s32.totalorder %s19, 0
    %p124 = por %p122, %p123
    %p125 = scmp.ne.s32.totalorder %s113, %s114
    %p126 = scmp.eq.s32.totalorder %s20, 1
    %p127 = por %p125, %p126
    %p129 = scmp.ne.s32.totalorder %s114, %s128
    %p130 = scmp.eq.s32.totalorder %s20, 0
    %p131 = por %p129, %p130
    %s133 = sadd.s32 %s132, 1
    %p136 = scmp.eq.s32.totalorder %s14, 1
    %p137 = scmp.ne.s32.totalorder %s132, %s134
    %p138 = scmp.eq.s32.totalorder %s14, 0
    %p139 = por %p137, %p138
    %p140 = scmp.ne.s32.totalorder %s132, %s134
    %p141 = scmp.eq.s32.totalorder %s19, 1
    %p142 = por %p140, %p141
    %p143 = scmp.ne.s32.totalorder %s134, %s135
    %p144 = scmp.eq.s32.totalorder %s19, 0
    %p145 = por %p143, %p144
    %p146 = scmp.ne.s32.totalorder %s134, %s135
    %p147 = scmp.eq.s32.totalorder %s20, 1
    %p148 = por %p146, %p147
    %p150 = scmp.ne.s32.totalorder %s135, %s149
    %p151 = scmp.eq.s32.totalorder %s20, 0
    %p152 = por %p150, %p151
    %s154 = sadd.s32 %s153, 1
    %p157 = scmp.eq.s32.totalorder %s14, 1
    %p158 = scmp.ne.s32.totalorder %s153, %s155
    %p159 = scmp.eq.s32.totalorder %s14, 0
    %p160 = por %p158, %p159
    %p161 = scmp.ne.s32.totalorder %s153, %s155
    %p162 = scmp.eq.s32.totalorder %s19, 1
    %p163 = por %p161, %p162
    %p164 = scmp.ne.s32.totalorder %s155, %s156
    %p165 = scmp.eq.s32.totalorder %s19, 0
    %p166 = por %p164, %p165
    %p167 = scmp.ne.s32.totalorder %s155, %s156
    %p168 = scmp.eq.s32.totalorder %s20, 1
    %p169 = por %p167, %p168
    %p171 = scmp.ne.s32.totalorder %s156, %s170
    %p172 = scmp.eq.s32.totalorder %s20, 0
    %p173 = por %p171, %p172
    %s174 = ssub.s32 %s14, %s21
    %p175 = scmp.eq.s32.totalorder %s174, 0
    %s177 = sadd.s32 %s176, 1
    %s178 = scalar_select %p175, %s176, %s177
    %p181 = pneg %p175
    %p182 = scmp.eq.s32.totalorder %s14, 1
    %p183 = por %p181, %p182
    %p184 = scmp.ne.s32.totalorder %s176, %s179
    %p185 = scmp.eq.s32.totalorder %s14, 0
    %p186 = por %p184, %p185
    %p187 = scmp.ne.s32.totalorder %s176, %s179
    %p188 = scmp.eq.s32.totalorder %s19, 1
    %p189 = por %p187, %p188
    %p190 = scmp.ne.s32.totalorder %s179, %s180
    %p191 = scmp.eq.s32.totalorder %s19, 0
    %p192 = por %p190, %p191
    %p193 = scmp.ne.s32.totalorder %s179, %s180
    %p194 = scmp.eq.s32.totalorder %s20, 1
    %p195 = por %p193, %p194
    %p197 = scmp.ne.s32.totalorder %s180, %s196
    %p198 = scmp.eq.s32.totalorder %s20, 0
    %p199 = por %p197, %p198
    %p200 = scmp.le.s32.totalorder 1, %s14
    %p201 = scmp.lt.s32.totalorder %s14, 3
    %p202 = pnand %p200, %p201
    %p203 = pneg %p202
    // Predicated region
    $region9: #{tpu_custom_call.1} parent=5 // pred_check
      _
    $region10: #{tpu_custom_call.1} parent=5 // pred_check_branch
      %205 = sbr.rel (%p202) target = $region12
    $region11: #{tpu_custom_call.1} parent=5 // pred_region
      %s206 = ssub.s32 %s14, 1
      // Predicated region
      $region13: #{tpu_custom_call.1} parent=11 // pred_check
        %p207 = pneg %p61
      $region14: #{tpu_custom_call.1} parent=11 // pred_check_branch
        %209 = sbr.rel (%p207) target = $region16
      $region15: #{tpu_custom_call.1} parent=11 // pred_region
        _
      $region16: #{tpu_custom_call.1} parent=11 // pred_fallthru
        _
      // Predicated region
      $region17: #{tpu_custom_call.1} parent=11 // pred_check
        %p210 = pneg %p82
      $region18: #{tpu_custom_call.1} parent=11 // pred_check_branch
        %212 = sbr.rel (%p210) target = $region20
      $region19: #{tpu_custom_call.1} parent=11 // pred_region
        _
      $region20: #{tpu_custom_call.1} parent=11 // pred_fallthru
        _
      // Predicated region
      $region21: #{tpu_custom_call.1} parent=11 // pred_check
        %p213 = pneg %p103
      $region22: #{tpu_custom_call.1} parent=11 // pred_check_branch
        %215 = sbr.rel (%p213) target = $region24
      $region23: #{tpu_custom_call.1} parent=11 // pred_region
        _
      $region24: #{tpu_custom_call.1} parent=11 // pred_fallthru
        _
      // Predicated region
      $region25: #{tpu_custom_call.1} parent=11 // pred_check
        %p216 = pneg %p124
      $region26: #{tpu_custom_call.1} parent=11 // pred_check_branch
        %218 = sbr.rel (%p216) target = $region28
      $region27: #{tpu_custom_call.1} parent=11 // pred_region
        _
      $region28: #{tpu_custom_call.1} parent=11 // pred_fallthru
        _
      // Predicated region
      $region29: #{tpu_custom_call.1} parent=11 // pred_check
        %p219 = pneg %p145
      $region30: #{tpu_custom_call.1} parent=11 // pred_check_branch
        %221 = sbr.rel (%p219) target = $region32
      $region31: #{tpu_custom_call.1} parent=11 // pred_region
        _
      $region32: #{tpu_custom_call.1} parent=11 // pred_fallthru
        _
      // Predicated region
      $region33: #{tpu_custom_call.1} parent=11 // pred_check
        %p222 = pneg %p166
      $region34: #{tpu_custom_call.1} parent=11 // pred_check_branch
        %224 = sbr.rel (%p222) target = $region36
      $region35: #{tpu_custom_call.1} parent=11 // pred_region
        _
      $region36: #{tpu_custom_call.1} parent=11 // pred_fallthru
        _
    $region12: #{tpu_custom_call.1} parent=5 // pred_fallthru
      _
    %p225 = scmp.lt.s32.totalorder %s14, 2
    // Predicated region
    $region37: #{tpu_custom_call.1} parent=5 // pred_check
      %p226 = pneg %p225
    $region38: #{tpu_custom_call.1} parent=5 // pred_check_branch
      %228 = sbr.rel (%p226) target = $region40
    $region39: #{tpu_custom_call.1} parent=5 // pred_region
      // Predicated region
      $region41: #{tpu_custom_call.1} parent=39 // pred_check
        %p229 = pneg %p34
      $region42: #{tpu_custom_call.1} parent=39 // pred_check_branch
        %231 = sbr.rel (%p229) target = $region44
      $region43: #{tpu_custom_call.1} parent=39 // pred_region
        %s232 = smul.u32 32, %s14
        %p233 = scmp.lt.s32.totalorder %s232, 63
        %s234 = scalar_select %p233, %s232, 63
        %s235 = smul.addr %s234, 8
        %s236 = scalar_lea.vmem %s0, %s235
        %s237 = smul.u32 32, %s14
      $region44: #{tpu_custom_call.1} parent=39 // pred_fallthru
        _
    $region40: #{tpu_custom_call.1} parent=5 // pred_fallthru
      _
    %p238 = scmp.le.s32.totalorder 1, %s14
    %p239 = scmp.lt.s32.totalorder %s14, 3
    %p240 = pnand %p238, %p239
    %p241 = pneg %p240
    // Predicated region
    $region45: #{tpu_custom_call.1} parent=5 // pred_check
      _
    $region46: #{tpu_custom_call.1} parent=5 // pred_check_branch
      %243 = sbr.rel (%p240) target = $region48
    $region47: #{tpu_custom_call.1} parent=5 // pred_region
      %s244 = ssub.s32 %s14, 1
      %s245 = smul.u32 32, %s19
      %p246 = scmp.lt.s32.totalorder %s245, 63
      %s247 = scalar_select %p246, %s245, 63
      %s248 = smul.addr %s247, 8
      %s249 = scalar_lea.vmem %s0, %s248
      %p250 = pneg %p40
      %p251 = pneg %p37
      %p252 = pneg %p61
      %p253 = pneg %p58
      %p254 = pneg %p82
      %p255 = pneg %p79
      %p256 = pneg %p103
      %p257 = pneg %p100
      %p258 = pneg %p124
      %p259 = pneg %p121
      %p260 = pneg %p145
      %p261 = pneg %p142
      %p262 = pneg %p166
      %p263 = pneg %p163
      %p264 = pneg %p192
      %p265 = pneg %p189
      %s266 = smul.u32 32, %s19
      %p267 = scmp.lt.s32.totalorder %s266, 63
      %s268 = scalar_select %p267, %s266, 63
      %s269 = smul.addr %s268, 8
      %s270 = scalar_lea.vmem %s7, %s269
      %s271 = smul.u32 32, %s19
      %p272 = scmp.lt.s32.totalorder %s271, 63
      %s273 = scalar_select %p272, %s271, 63
      %s274 = smul.addr %s273, 8
      %s275 = scalar_lea.vmem %s0, %s274
      %s276 = smul.u32 32, %s19
      %s277 = smul.u32 32, %s19
      %p278 = scmp.lt.s32.totalorder %s277, 63
      %s279 = scalar_select %p278, %s277, 63
      %s280 = smul.addr %s279, 8
      %s281 = scalar_lea.vmem %s7, %s280
      %s282 = smul.u32 32, %s19
      %v284 = vld [vmem:[%s275] sm:$0xff]
      %v285 = vld [vmem:[%s275 + $0x8] sm:$0xff]
      %v286 = vld [vmem:[%s275 + $0x10] sm:$0xff]
      %v287 = vld [vmem:[%s275 + $0x18] sm:$0xff]
      %v288 = vld [vmem:[%s275 + $0x20] sm:$0xff]
      %v289 = vld [vmem:[%s275 + $0x28] sm:$0xff]
      %v290 = vld [vmem:[%s275 + $0x30] sm:$0xff]
      %v291 = vld [vmem:[%s275 + $0x38] sm:$0xff]
      %v292 = vld [vmem:[%s275 + $0x40] sm:$0xff]
      %v293 = vld [vmem:[%s275 + $0x48] sm:$0xff]
      %v294 = vld [vmem:[%s275 + $0x50] sm:$0xff]
      %v295 = vld [vmem:[%s275 + $0x58] sm:$0xff]
      %v296 = vld [vmem:[%s275 + $0x60] sm:$0xff]
      %v297 = vld [vmem:[%s275 + $0x68] sm:$0xff]
      %v298 = vld [vmem:[%s275 + $0x70] sm:$0xff]
      %v299 = vld [vmem:[%s275 + $0x78] sm:$0xff]
      %v300 = vld [vmem:[%s275 + $0x80] sm:$0xff]
      %v301 = vld [vmem:[%s275 + $0x88] sm:$0xff]
      %v302 = vld [vmem:[%s275 + $0x90] sm:$0xff]
      %v303 = vld [vmem:[%s275 + $0x98] sm:$0xff]
      %v304 = vld [vmem:[%s275 + $0xa0] sm:$0xff]
      %v305 = vld [vmem:[%s275 + $0xa8] sm:$0xff]
      %v306 = vld [vmem:[%s275 + $0xb0] sm:$0xff]
      %v307 = vld [vmem:[%s275 + $0xb8] sm:$0xff]
      %v308 = vld [vmem:[%s275 + $0xc0] sm:$0xff]
      %v309 = vld [vmem:[%s275 + $0xc8] sm:$0xff]
      %v310 = vld [vmem:[%s275 + $0xd0] sm:$0xff]
      %v311 = vld [vmem:[%s275 + $0xd8] sm:$0xff]
      %v312 = vld [vmem:[%s275 + $0xe0] sm:$0xff]
      %v313 = vld [vmem:[%s275 + $0xe8] sm:$0xff]
      %v314 = vld [vmem:[%s275 + $0xf0] sm:$0xff]
      %v315 = vld [vmem:[%s275 + $0xf8] sm:$0xff]
      %v316 = vpack.c.bf16 %v285, %v284
      %v317 = vpack.c.bf16 %v287, %v286
      %v318 = vpack.c.bf16 %v289, %v288
      %v319 = vpack.c.bf16 %v291, %v290
      %v320 = vpack.c.bf16 %v293, %v292
      %v321 = vpack.c.bf16 %v295, %v294
      %v322 = vpack.c.bf16 %v297, %v296
      %v323 = vpack.c.bf16 %v299, %v298
      %v324 = vpack.c.bf16 %v301, %v300
      %v325 = vpack.c.bf16 %v303, %v302
      %v326 = vpack.c.bf16 %v305, %v304
      %v327 = vpack.c.bf16 %v307, %v306
      %v328 = vpack.c.bf16 %v309, %v308
      %v329 = vpack.c.bf16 %v311, %v310
      %v330 = vpack.c.bf16 %v313, %v312
      %v331 = vpack.c.bf16 %v315, %v314
      %v332 = vld [vmem:[%s1] sm:$0xff]
      %v333 = vld [vmem:[%s1 + $0x8] sm:$0xff]
      %v334 = vld [vmem:[%s2] sm:$0x3]
      %v336 = vlaneseq
      %v337 = vshrl.u32 %v336, 7
      %v338 = vsub.s32 0, %v337
      %v339 = vrot.slane %v334, %v338
      %v340 = vlaneseq
      %v341 = vshrl.u32 %v340, 7
      %v342 = vsub.s32 1, %v341
      %v343 = vrot.slane %v334, %v342
      %v348 = vunpack.c.l.b16 %v332
      %v349 = vunpack.c.h.b16 %v332
      %v350 = vunpack.c.l.b16 %v333
      %v351 = vunpack.c.h.b16 %v333
      %v352 = vpack.c.b16 %v350, %v348
      %v353 = vpack.c.b16 %v351, %v349
      %vm356 = vcmask 130048
      %v358 = vsel %vm356, %v316, 0
      %v361 = vsel %vm356, %v317, 0
      %v364 = vsel %vm356, %v318, 0
      %v367 = vsel %vm356, %v319, 0
      %v370 = vsel %vm356, %v320, 0
      %v373 = vsel %vm356, %v321, 0
      %v376 = vsel %vm356, %v322, 0
      %v379 = vsel %vm356, %v323, 0
      %v382 = vsel %vm356, %v324, 0
      %v385 = vsel %vm356, %v325, 0
      %v388 = vsel %vm356, %v326, 0
      %v391 = vsel %vm356, %v327, 0
      %v394 = vsel %vm356, %v328, 0
      %v397 = vsel %vm356, %v329, 0
      %v400 = vsel %vm356, %v330, 0
      %v403 = vsel %vm356, %v331, 0
      %405 = vmatprep.subr.bf16.mxu0 %v353
      %406 = vmatpush1.bf16.msra.mxu0 %v352
      %407 = vmatprep.subr.bf16.mxu0 0
      %408 = vmatpush1.bf16.msra.mxu0 0
      %409 = vmatprep.subr.bf16.mxu0 0
      %410 = vmatpush1.bf16.msra.mxu0 0
      %411 = vmatprep.subr.bf16.mxu0 0
      %412 = vmatpush1.bf16.msra.mxu0 0
      %413 = vmatprep.subr.bf16.mxu0 0
      %414 = vmatpush1.bf16.msra.mxu0 0
      %415 = vmatprep.subr.bf16.mxu0 0
      %416 = vmatpush1.bf16.msra.mxu0 0
      %417 = vmatprep.subr.bf16.mxu0 0
      %418 = vmatpush1.bf16.msra.mxu0 0
      %419 = vmatprep.subr.bf16.mxu0 0
      %420 = vmatpush1.bf16.msra.mxu0 0
      %421 = vmatprep.subr.bf16.mxu0 0
      %422 = vmatpush1.bf16.msra.mxu0 0
      %423 = vmatprep.subr.bf16.mxu0 0
      %424 = vmatpush1.bf16.msra.mxu0 0
      %425 = vmatprep.subr.bf16.mxu0 0
      %426 = vmatpush1.bf16.msra.mxu0 0
      %427 = vmatprep.subr.bf16.mxu0 0
      %428 = vmatpush1.bf16.msra.mxu0 0
      %429 = vmatprep.subr.bf16.mxu0 0
      %430 = vmatpush1.bf16.msra.mxu0 0
      %431 = vmatprep.subr.bf16.mxu0 0
      %432 = vmatpush1.bf16.msra.mxu0 0
      %433 = vmatprep.subr.bf16.mxu0 0
      %434 = vmatpush1.bf16.msra.mxu0 0
      %435 = vmatprep.subr.bf16.mxu0 0
      %436 = vmatpush1.bf16.msra.mxu0 0
      %437 = vmatprep.mubr.bf16.mxu0 0
      %438 = vmatmul.mubr.bf16.gmra.mrb[0].mxu0 %v358
      %v439 = vpop.f32.mrb[0].mxu0
      %v440 = vadd.f32 %v339, %v439
      %v441 = vpop.f32.mrb[0].mxu0
      %v442 = vadd.f32 %v343, %v441
      %v443 = vpop.f32.mrb[0].mxu0
      %v444 = vadd.f32 %v339, %v443
      %v445 = vpop.f32.mrb[0].mxu0
      %v446 = vadd.f32 %v343, %v445
      %447 = vmatprep.mubr.bf16.mxu0 0
      %448 = vmatmul.mubr.bf16.gmra.mrb[0].mxu0 %v361
      %v449 = vpop.f32.mrb[0].mxu0
      %v450 = vadd.f32 %v339, %v449
      %v451 = vpop.f32.mrb[0].mxu0
      %v452 = vadd.f32 %v343, %v451
      %v453 = vpop.f32.mrb[0].mxu0
      %v454 = vadd.f32 %v339, %v453
      %v455 = vpop.f32.mrb[0].mxu0
      %v456 = vadd.f32 %v343, %v455
      %457 = vmatprep.mubr.bf16.mxu0 0
      %458 = vmatmul.mubr.bf16.gmra.mrb[0].mxu0 %v364
      %v459 = vpop.f32.mrb[0].mxu0
      %v460 = vadd.f32 %v339, %v459
      %v461 = vpop.f32.mrb[0].mxu0
      %v462 = vadd.f32 %v343, %v461
      %v463 = vpop.f32.mrb[0].mxu0
      %v464 = vadd.f32 %v339, %v463
      %v465 = vpop.f32.mrb[0].mxu0
      %v466 = vadd.f32 %v343, %v465
      %467 = vmatprep.mubr.bf16.mxu0 0
      %468 = vmatmul.mubr.bf16.gmra.mrb[0].mxu0 %v367
      %v469 = vpop.f32.mrb[0].mxu0
      %v470 = vadd.f32 %v339, %v469
      %v471 = vpop.f32.mrb[0].mxu0
      %v472 = vadd.f32 %v343, %v471
      %v473 = vpop.f32.mrb[0].mxu0
      %v474 = vadd.f32 %v339, %v473
      %v475 = vpop.f32.mrb[0].mxu0
      %v476 = vadd.f32 %v343, %v475
      %477 = vmatprep.mubr.bf16.mxu0 0
      %478 = vmatmul.mubr.bf16.gmra.mrb[0].mxu0 %v370
      %v479 = vpop.f32.mrb[0].mxu0
      %v480 = vadd.f32 %v339, %v479
      %v481 = vpop.f32.mrb[0].mxu0
      %v482 = vadd.f32 %v343, %v481
      %v483 = vpop.f32.mrb[0].mxu0
      %v484 = vadd.f32 %v339, %v483
      %v485 = vpop.f32.mrb[0].mxu0
      %v486 = vadd.f32 %v343, %v485
      %487 = vmatprep.mubr.bf16.mxu0 0
      %488 = vmatmul.mubr.bf16.gmra.mrb[0].mxu0 %v373
      %v489 = vpop.f32.mrb[0].mxu0
      %v490 = vadd.f32 %v339, %v489
      %v491 = vpop.f32.mrb[0].mxu0
      %v492 = vadd.f32 %v343, %v491
      %v493 = vpop.f32.mrb[0].mxu0
      %v494 = vadd.f32 %v339, %v493
      %v495 = vpop.f32.mrb[0].mxu0
      %v496 = vadd.f32 %v343, %v495
      %497 = vmatprep.mubr.bf16.mxu0 0
      %498 = vmatmul.mubr.bf16.gmra.mrb[0].mxu0 %v376
      %v499 = vpop.f32.mrb[0].mxu0
      %v500 = vadd.f32 %v339, %v499
      %v501 = vpop.f32.mrb[0].mxu0
      %v502 = vadd.f32 %v343, %v501
      %v503 = vpop.f32.mrb[0].mxu0
      %v504 = vadd.f32 %v339, %v503
      %v505 = vpop.f32.mrb[0].mxu0
      %v506 = vadd.f32 %v343, %v505
      %507 = vmatprep.mubr.bf16.mxu0 0
      %508 = vmatmul.mubr.bf16.gmra.mrb[0].mxu0 %v379
      %v509 = vpop.f32.mrb[0].mxu0
      %v510 = vadd.f32 %v339, %v509
      %v511 = vpop.f32.mrb[0].mxu0
      %v512 = vadd.f32 %v343, %v511
      %v513 = vpop.f32.mrb[0].mxu0
      %v514 = vadd.f32 %v339, %v513
      %v515 = vpop.f32.mrb[0].mxu0
      %v516 = vadd.f32 %v343, %v515
      %517 = vmatprep.mubr.bf16.mxu0 0
      %518 = vmatmul.mubr.bf16.gmra.mrb[0].mxu0 %v382
      %v519 = vpop.f32.mrb[0].mxu0
      %v520 = vadd.f32 %v339, %v519
      %v521 = vpop.f32.mrb[0].mxu0
      %v522 = vadd.f32 %v343, %v521
      %v523 = vpop.f32.mrb[0].mxu0
      %v524 = vadd.f32 %v339, %v523
      %v525 = vpop.f32.mrb[0].mxu0
      %v526 = vadd.f32 %v343, %v525
      %527 = vmatprep.mubr.bf16.mxu0 0
      %528 = vmatmul.mubr.bf16.gmra.mrb[0].mxu0 %v385
      %v529 = vpop.f32.mrb[0].mxu0
      %v530 = vadd.f32 %v339, %v529
      %v531 = vpop.f32.mrb[0].mxu0
      %v532 = vadd.f32 %v343, %v531
      %v533 = vpop.f32.mrb[0].mxu0
      %v534 = vadd.f32 %v339, %v533
      %v535 = vpop.f32.mrb[0].mxu0
      %v536 = vadd.f32 %v343, %v535
      %537 = vmatprep.mubr.bf16.mxu0 0
      %538 = vmatmul.mubr.bf16.gmra.mrb[0].mxu0 %v388
      %v539 = vpop.f32.mrb[0].mxu0
      %v540 = vadd.f32 %v339, %v539
      %v541 = vpop.f32.mrb[0].mxu0
      %v542 = vadd.f32 %v343, %v541
      %v543 = vpop.f32.mrb[0].mxu0
      %v544 = vadd.f32 %v339, %v543
      %v545 = vpop.f32.mrb[0].mxu0
      %v546 = vadd.f32 %v343, %v545
      %547 = vmatprep.mubr.bf16.mxu0 0
      %548 = vmatmul.mubr.bf16.gmra.mrb[0].mxu0 %v391
      %v549 = vpop.f32.mrb[0].mxu0
      %v550 = vadd.f32 %v339, %v549
      %v551 = vpop.f32.mrb[0].mxu0
      %v552 = vadd.f32 %v343, %v551
      %v553 = vpop.f32.mrb[0].mxu0
      %v554 = vadd.f32 %v339, %v553
      %v555 = vpop.f32.mrb[0].mxu0
      %v556 = vadd.f32 %v343, %v555
      %557 = vmatprep.mubr.bf16.mxu0 0
      %558 = vmatmul.mubr.bf16.gmra.mrb[0].mxu0 %v394
      %v559 = vpop.f32.mrb[0].mxu0
      %v560 = vadd.f32 %v339, %v559
      %v561 = vpop.f32.mrb[0].mxu0
      %v562 = vadd.f32 %v343, %v561
      %v563 = vpop.f32.mrb[0].mxu0
      %v564 = vadd.f32 %v339, %v563
      %v565 = vpop.f32.mrb[0].mxu0
      %v566 = vadd.f32 %v343, %v565
      %567 = vmatprep.mubr.bf16.mxu0 0
      %568 = vmatmul.mubr.bf16.gmra.mrb[0].mxu0 %v397
      %v569 = vpop.f32.mrb[0].mxu0
      %v570 = vadd.f32 %v339, %v569
      %v571 = vpop.f32.mrb[0].mxu0
      %v572 = vadd.f32 %v343, %v571
      %v573 = vpop.f32.mrb[0].mxu0
      %v574 = vadd.f32 %v339, %v573
      %v575 = vpop.f32.mrb[0].mxu0
      %v576 = vadd.f32 %v343, %v575
      %577 = vmatprep.mubr.bf16.mxu0 0
      %578 = vmatmul.mubr.bf16.gmra.mrb[0].mxu0 %v400
      %v579 = vpop.f32.mrb[0].mxu0
      %v580 = vadd.f32 %v339, %v579
      %v581 = vpop.f32.mrb[0].mxu0
      %v582 = vadd.f32 %v343, %v581
      %v583 = vpop.f32.mrb[0].mxu0
      %v584 = vadd.f32 %v339, %v583
      %v585 = vpop.f32.mrb[0].mxu0
      %v586 = vadd.f32 %v343, %v585
      %587 = vmatprep.mubr.bf16.mxu0 0
      %588 = vmatmul.mubr.bf16.gmra.mrb[0].mxu0 %v403
      %v589 = vpop.f32.mrb[0].mxu0
      %v590 = vadd.f32 %v339, %v589
      %v591 = vpop.f32.mrb[0].mxu0
      %v592 = vadd.f32 %v343, %v591
      %v593 = vpop.f32.mrb[0].mxu0
      %v594 = vadd.f32 %v339, %v593
      %v595 = vpop.f32.mrb[0].mxu0
      %v596 = vadd.f32 %v343, %v595
      %597 = vdwg.mxu0
      %v598 = vmax.f32 %v440, 0.0
      %v599 = vmax.f32 %v442, 0.0
      %v600 = vmax.f32 %v444, 0.0
      %v601 = vmax.f32 %v446, 0.0
      %v602 = vmax.f32 %v450, 0.0
      %v603 = vmax.f32 %v452, 0.0
      %v604 = vmax.f32 %v454, 0.0
      %v605 = vmax.f32 %v456, 0.0
      %v606 = vmax.f32 %v460, 0.0
      %v607 = vmax.f32 %v462, 0.0
      %v608 = vmax.f32 %v464, 0.0
      %v609 = vmax.f32 %v466, 0.0
      %v610 = vmax.f32 %v470, 0.0
      %v611 = vmax.f32 %v472, 0.0
      %v612 = vmax.f32 %v474, 0.0
      %v613 = vmax.f32 %v476, 0.0
      %v614 = vmax.f32 %v480, 0.0
      %v615 = vmax.f32 %v482, 0.0
      %v616 = vmax.f32 %v484, 0.0
      %v617 = vmax.f32 %v486, 0.0
      %v618 = vmax.f32 %v490, 0.0
      %v619 = vmax.f32 %v492, 0.0
      %v620 = vmax.f32 %v494, 0.0
      %v621 = vmax.f32 %v496, 0.0
      %v622 = vmax.f32 %v500, 0.0
      %v623 = vmax.f32 %v502, 0.0
      %v624 = vmax.f32 %v504, 0.0
      %v625 = vmax.f32 %v506, 0.0
      %v626 = vmax.f32 %v510, 0.0
      %v627 = vmax.f32 %v512, 0.0
      %v628 = vmax.f32 %v514, 0.0
      %v629 = vmax.f32 %v516, 0.0
      %v630 = vmax.f32 %v520, 0.0
      %v631 = vmax.f32 %v522, 0.0
      %v632 = vmax.f32 %v524, 0.0
      %v633 = vmax.f32 %v526, 0.0
      %v634 = vmax.f32 %v530, 0.0
      %v635 = vmax.f32 %v532, 0.0
      %v636 = vmax.f32 %v534, 0.0
      %v637 = vmax.f32 %v536, 0.0
      %v638 = vmax.f32 %v540, 0.0
      %v639 = vmax.f32 %v542, 0.0
      %v640 = vmax.f32 %v544, 0.0
      %v641 = vmax.f32 %v546, 0.0
      %v642 = vmax.f32 %v550, 0.0
      %v643 = vmax.f32 %v552, 0.0
      %v644 = vmax.f32 %v554, 0.0
      %v645 = vmax.f32 %v556, 0.0
      %v646 = vmax.f32 %v560, 0.0
      %v647 = vmax.f32 %v562, 0.0
      %v648 = vmax.f32 %v564, 0.0
      %v649 = vmax.f32 %v566, 0.0
      %v650 = vmax.f32 %v570, 0.0
      %v651 = vmax.f32 %v572, 0.0
      %v652 = vmax.f32 %v574, 0.0
      %v653 = vmax.f32 %v576, 0.0
      %v654 = vmax.f32 %v580, 0.0
      %v655 = vmax.f32 %v582, 0.0
      %v656 = vmax.f32 %v584, 0.0
      %v657 = vmax.f32 %v586, 0.0
      %v658 = vmax.f32 %v590, 0.0
      %v659 = vmax.f32 %v592, 0.0
      %v660 = vmax.f32 %v594, 0.0
      %v661 = vmax.f32 %v596, 0.0
      %v662 = vpack.c.bf16 %v600, %v598
      %v663 = vpack.c.bf16 %v601, %v599
      %v664 = vpack.c.bf16 %v604, %v602
      %v665 = vpack.c.bf16 %v605, %v603
      %v666 = vpack.c.bf16 %v608, %v606
      %v667 = vpack.c.bf16 %v609, %v607
      %v668 = vpack.c.bf16 %v612, %v610
      %v669 = vpack.c.bf16 %v613, %v611
      %v670 = vpack.c.bf16 %v616, %v614
      %v671 = vpack.c.bf16 %v617, %v615
      %v672 = vpack.c.bf16 %v620, %v618
      %v673 = vpack.c.bf16 %v621, %v619
      %v674 = vpack.c.bf16 %v624, %v622
      %v675 = vpack.c.bf16 %v625, %v623
      %v676 = vpack.c.bf16 %v628, %v626
      %v677 = vpack.c.bf16 %v629, %v627
      %v678 = vpack.c.bf16 %v632, %v630
      %v679 = vpack.c.bf16 %v633, %v631
      %v680 = vpack.c.bf16 %v636, %v634
      %v681 = vpack.c.bf16 %v637, %v635
      %v682 = vpack.c.bf16 %v640, %v638
      %v683 = vpack.c.bf16 %v641, %v639
      %v684 = vpack.c.bf16 %v644, %v642
      %v685 = vpack.c.bf16 %v645, %v643
      %v686 = vpack.c.bf16 %v648, %v646
      %v687 = vpack.c.bf16 %v649, %v647
      %v688 = vpack.c.bf16 %v652, %v650
      %v689 = vpack.c.bf16 %v653, %v651
      %v690 = vpack.c.bf16 %v656, %v654
      %v691 = vpack.c.bf16 %v657, %v655
      %v692 = vpack.c.bf16 %v660, %v658
      %v693 = vpack.c.bf16 %v661, %v659
      %v694 = vld [vmem:[%s3] sm:$0xff]
      %v695 = vld [vmem:[%s3 + $0x8] sm:$0xff]
      %v696 = vld [vmem:[%s3 + $0x10] sm:$0xff]
      %v697 = vld [vmem:[%s3 + $0x18] sm:$0xff]
      %v698 = vld [vmem:[%s3 + $0x20] sm:$0xff]
      %v699 = vld [vmem:[%s3 + $0x28] sm:$0xff]
      %v700 = vld [vmem:[%s3 + $0x30] sm:$0xff]
      %v701 = vld [vmem:[%s3 + $0x38] sm:$0xff]
      %v702 = vld [vmem:[%s3 + $0x40] sm:$0xff]
      %v703 = vld [vmem:[%s3 + $0x48] sm:$0xff]
      %v704 = vld [vmem:[%s3 + $0x50] sm:$0xff]
      %v705 = vld [vmem:[%s3 + $0x58] sm:$0xff]
      %v706 = vld [vmem:[%s3 + $0x60] sm:$0xff]
      %v707 = vld [vmem:[%s3 + $0x68] sm:$0xff]
      %v708 = vld [vmem:[%s3 + $0x70] sm:$0xff]
      %v709 = vld [vmem:[%s3 + $0x78] sm:$0xff]
      %v710 = vld [vmem:[%s3 + $0x80] sm:$0xff]
      %v711 = vld [vmem:[%s3 + $0x88] sm:$0xff]
      %v712 = vld [vmem:[%s3 + $0x90] sm:$0xff]
      %v713 = vld [vmem:[%s3 + $0x98] sm:$0xff]
      %v714 = vld [vmem:[%s3 + $0xa0] sm:$0xff]
      %v715 = vld [vmem:[%s3 + $0xa8] sm:$0xff]
      %v716 = vld [vmem:[%s3 + $0xb0] sm:$0xff]
      %v717 = vld [vmem:[%s3 + $0xb8] sm:$0xff]
      %v718 = vld [vmem:[%s3 + $0xc0] sm:$0xff]
      %v719 = vld [vmem:[%s3 + $0xc8] sm:$0xff]
      %v720 = vld [vmem:[%s3 + $0xd0] sm:$0xff]
      %v721 = vld [vmem:[%s3 + $0xd8] sm:$0xff]
      %v722 = vld [vmem:[%s3 + $0xe0] sm:$0xff]
      %v723 = vld [vmem:[%s3 + $0xe8] sm:$0xff]
      %v724 = vld [vmem:[%s3 + $0xf0] sm:$0xff]
      %v725 = vld [vmem:[%s3 + $0xf8] sm:$0xff]
      %v726 = vld [vmem:[%s4] sm:$0x3]
      %v728 = vlaneseq
      %v729 = vshrl.u32 %v728, 7
      %v730 = vsub.s32 0, %v729
      %v731 = vrot.slane %v726, %v730
      %v732 = vlaneseq
      %v733 = vshrl.u32 %v732, 7
      %v734 = vsub.s32 1, %v733
      %v735 = vrot.slane %v726, %v734
      %v770 = vunpack.c.l.b16 %v694
      %v771 = vunpack.c.h.b16 %v694
      %v772 = vunpack.c.l.b16 %v695
      %v773 = vunpack.c.h.b16 %v695
      %v774 = vunpack.c.l.b16 %v696
      %v775 = vunpack.c.h.b16 %v696
      %v776 = vunpack.c.l.b16 %v697
      %v777 = vunpack.c.h.b16 %v697
      %v778 = vunpack.c.l.b16 %v698
      %v779 = vunpack.c.h.b16 %v698
      %v780 = vunpack.c.l.b16 %v699
      %v781 = vunpack.c.h.b16 %v699
      %v782 = vunpack.c.l.b16 %v700
      %v783 = vunpack.c.h.b16 %v700
      %v784 = vunpack.c.l.b16 %v701
      %v785 = vunpack.c.h.b16 %v701
      %v786 = vunpack.c.l.b16 %v702
      %v787 = vunpack.c.h.b16 %v702
      %v788 = vunpack.c.l.b16 %v703
      %v789 = vunpack.c.h.b16 %v703
      %v790 = vunpack.c.l.b16 %v704
      %v791 = vunpack.c.h.b16 %v704
      %v792 = vunpack.c.l.b16 %v705
      %v793 = vunpack.c.h.b16 %v705
      %v794 = vunpack.c.l.b16 %v706
      %v795 = vunpack.c.h.b16 %v706
      %v796 = vunpack.c.l.b16 %v707
      %v797 = vunpack.c.h.b16 %v707
      %v798 = vunpack.c.l.b16 %v708
      %v799 = vunpack.c.h.b16 %v708
      %v800 = vunpack.c.l.b16 %v709
      %v801 = vunpack.c.h.b16 %v709
      %v802 = vunpack.c.l.b16 %v710
      %v803 = vunpack.c.h.b16 %v710
      %v804 = vunpack.c.l.b16 %v711
      %v805 = vunpack.c.h.b16 %v711
      %v806 = vunpack.c.l.b16 %v712
      %v807 = vunpack.c.h.b16 %v712
      %v808 = vunpack.c.l.b16 %v713
      %v809 = vunpack.c.h.b16 %v713
      %v810 = vunpack.c.l.b16 %v714
      %v811 = vunpack.c.h.b16 %v714
      %v812 = vunpack.c.l.b16 %v715
      %v813 = vunpack.c.h.b16 %v715
      %v814 = vunpack.c.l.b16 %v716
      %v815 = vunpack.c.h.b16 %v716
      %v816 = vunpack.c.l.b16 %v717
      %v817 = vunpack.c.h.b16 %v717
      %v818 = vunpack.c.l.b16 %v718
      %v819 = vunpack.c.h.b16 %v718
      %v820 = vunpack.c.l.b16 %v719
      %v821 = vunpack.c.h.b16 %v719
      %v822 = vunpack.c.l.b16 %v720
      %v823 = vunpack.c.h.b16 %v720
      %v824 = vunpack.c.l.b16 %v721
      %v825 = vunpack.c.h.b16 %v721
      %v826 = vunpack.c.l.b16 %v722
      %v827 = vunpack.c.h.b16 %v722
      %v828 = vunpack.c.l.b16 %v723
      %v829 = vunpack.c.h.b16 %v723
      %v830 = vunpack.c.l.b16 %v724
      %v831 = vunpack.c.h.b16 %v724
      %v832 = vunpack.c.l.b16 %v725
      %v833 = vunpack.c.h.b16 %v725
      %v834 = vpack.c.b16 %v772, %v770
      %v835 = vpack.c.b16 %v773, %v771
      %v836 = vpack.c.b16 %v776, %v774
      %v837 = vpack.c.b16 %v777, %v775
      %v838 = vpack.c.b16 %v780, %v778
      %v839 = vpack.c.b16 %v781, %v779
      %v840 = vpack.c.b16 %v784, %v782
      %v841 = vpack.c.b16 %v785, %v783
      %v842 = vpack.c.b16 %v788, %v786
      %v843 = vpack.c.b16 %v789, %v787
      %v844 = vpack.c.b16 %v792, %v790
      %v845 = vpack.c.b16 %v793, %v791
      %v846 = vpack.c.b16 %v796, %v794
      %v847 = vpack.c.b16 %v797, %v795
      %v848 = vpack.c.b16 %v800, %v798
      %v849 = vpack.c.b16 %v801, %v799
      %v850 = vpack.c.b16 %v804, %v802
      %v851 = vpack.c.b16 %v805, %v803
      %v852 = vpack.c.b16 %v808, %v806
      %v853 = vpack.c.b16 %v809, %v807
      %v854 = vpack.c.b16 %v812, %v810
      %v855 = vpack.c.b16 %v813, %v811
      %v856 = vpack.c.b16 %v816, %v814
      %v857 = vpack.c.b16 %v817, %v815
      %v858 = vpack.c.b16 %v820, %v818
      %v859 = vpack.c.b16 %v821, %v819
      %v860 = vpack.c.b16 %v824, %v822
      %v861 = vpack.c.b16 %v825, %v823
      %v862 = vpack.c.b16 %v828, %v826
      %v863 = vpack.c.b16 %v829, %v827
      %v864 = vpack.c.b16 %v832, %v830
      %v865 = vpack.c.b16 %v833, %v831
      %898 = vmatprep.subr.bf16.mxu0 %v835
      %899 = vmatpush1.bf16.msra.mxu0 %v834
      %900 = vmatprep.subr.bf16.mxu0 %v837
      %901 = vmatpush1.bf16.msra.mxu0 %v836
      %902 = vmatprep.subr.bf16.mxu0 %v839
      %903 = vmatpush1.bf16.msra.mxu0 %v838
      %904 = vmatprep.subr.bf16.mxu0 %v841
      %905 = vmatpush1.bf16.msra.mxu0 %v840
      %906 = vmatprep.subr.bf16.mxu0 %v843
      %907 = vmatpush1.bf16.msra.mxu0 %v842
      %908 = vmatprep.subr.bf16.mxu0 %v845
      %909 = vmatpush1.bf16.msra.mxu0 %v844
      %910 = vmatprep.subr.bf16.mxu0 %v847
      %911 = vmatpush1.bf16.msra.mxu0 %v846
      %912 = vmatprep.subr.bf16.mxu0 %v849
      %913 = vmatpush1.bf16.msra.mxu0 %v848
      %914 = vmatprep.subr.bf16.mxu0 %v851
      %915 = vmatpush1.bf16.msra.mxu0 %v850
      %916 = vmatprep.subr.bf16.mxu0 %v853
      %917 = vmatpush1.bf16.msra.mxu0 %v852
      %918 = vmatprep.subr.bf16.mxu0 %v855
      %919 = vmatpush1.bf16.msra.mxu0 %v854
      %920 = vmatprep.subr.bf16.mxu0 %v857
      %921 = vmatpush1.bf16.msra.mxu0 %v856
      %922 = vmatprep.subr.bf16.mxu0 %v859
      %923 = vmatpush1.bf16.msra.mxu0 %v858
      %924 = vmatprep.subr.bf16.mxu0 %v861
      %925 = vmatpush1.bf16.msra.mxu0 %v860
      %926 = vmatprep.subr.bf16.mxu0 %v863
      %927 = vmatpush1.bf16.msra.mxu0 %v862
      %928 = vmatprep.subr.bf16.mxu0 %v865
      %929 = vmatpush1.bf16.msra.mxu0 %v864
      %930 = vmatprep.mubr.bf16.mxu0 %v663
      %931 = vmatmul.mubr.bf16.gmra.mrb[0].mxu0 %v662
      %v932 = vpop.f32.mrb[0].mxu0
      %v933 = vadd.f32 %v731, %v932
      %v934 = vpop.f32.mrb[0].mxu0
      %v935 = vadd.f32 %v735, %v934
      %v936 = vpop.f32.mrb[0].mxu0
      %v937 = vadd.f32 %v731, %v936
      %v938 = vpop.f32.mrb[0].mxu0
      %v939 = vadd.f32 %v735, %v938
      %940 = vmatprep.mubr.bf16.mxu0 %v665
      %941 = vmatmul.mubr.bf16.gmra.mrb[0].mxu0 %v664
      %v942 = vpop.f32.mrb[0].mxu0
      %v943 = vadd.f32 %v731, %v942
      %v944 = vpop.f32.mrb[0].mxu0
      %v945 = vadd.f32 %v735, %v944
      %v946 = vpop.f32.mrb[0].mxu0
      %v947 = vadd.f32 %v731, %v946
      %v948 = vpop.f32.mrb[0].mxu0
      %v949 = vadd.f32 %v735, %v948
      %950 = vmatprep.mubr.bf16.mxu0 %v667
      %951 = vmatmul.mubr.bf16.gmra.mrb[0].mxu0 %v666
      %v952 = vpop.f32.mrb[0].mxu0
      %v953 = vadd.f32 %v731, %v952
      %v954 = vpop.f32.mrb[0].mxu0
      %v955 = vadd.f32 %v735, %v954
      %v956 = vpop.f32.mrb[0].mxu0
      %v957 = vadd.f32 %v731, %v956
      %v958 = vpop.f32.mrb[0].mxu0
      %v959 = vadd.f32 %v735, %v958
      %960 = vmatprep.mubr.bf16.mxu0 %v669
      %961 = vmatmul.mubr.bf16.gmra.mrb[0].mxu0 %v668
      %v962 = vpop.f32.mrb[0].mxu0
      %v963 = vadd.f32 %v731, %v962
      %v964 = vpop.f32.mrb[0].mxu0
      %v965 = vadd.f32 %v735, %v964
      %v966 = vpop.f32.mrb[0].mxu0
      %v967 = vadd.f32 %v731, %v966
      %v968 = vpop.f32.mrb[0].mxu0
      %v969 = vadd.f32 %v735, %v968
      %970 = vmatprep.mubr.bf16.mxu0 %v671
      %971 = vmatmul.mubr.bf16.gmra.mrb[0].mxu0 %v670
      %v972 = vpop.f32.mrb[0].mxu0
      %v973 = vadd.f32 %v731, %v972
      %v974 = vpop.f32.mrb[0].mxu0
      %v975 = vadd.f32 %v735, %v974
      %v976 = vpop.f32.mrb[0].mxu0
      %v977 = vadd.f32 %v731, %v976
      %v978 = vpop.f32.mrb[0].mxu0
      %v979 = vadd.f32 %v735, %v978
      %980 = vmatprep.mubr.bf16.mxu0 %v673
      %981 = vmatmul.mubr.bf16.gmra.mrb[0].mxu0 %v672
      %v982 = vpop.f32.mrb[0].mxu0
      %v983 = vadd.f32 %v731, %v982
      %v984 = vpop.f32.mrb[0].mxu0
      %v985 = vadd.f32 %v735, %v984
      %v986 = vpop.f32.mrb[0].mxu0
      %v987 = vadd.f32 %v731, %v986
      %v988 = vpop.f32.mrb[0].mxu0
      %v989 = vadd.f32 %v735, %v988
      %990 = vmatprep.mubr.bf16.mxu0 %v675
      %991 = vmatmul.mubr.bf16.gmra.mrb[0].mxu0 %v674
      %v992 = vpop.f32.mrb[0].mxu0
      %v993 = vadd.f32 %v731, %v992
      %v994 = vpop.f32.mrb[0].mxu0
      %v995 = vadd.f32 %v735, %v994
      %v996 = vpop.f32.mrb[0].mxu0
      %v997 = vadd.f32 %v731, %v996
      %v998 = vpop.f32.mrb[0].mxu0
      %v999 = vadd.f32 %v735, %v998
      %1000 = vmatprep.mubr.bf16.mxu0 %v677
      %1001 = vmatmul.mubr.bf16.gmra.mrb[0].mxu0 %v676
      %v1002 = vpop.f32.mrb[0].mxu0
      %v1003 = vadd.f32 %v731, %v1002
      %v1004 = vpop.f32.mrb[0].mxu0
      %v1005 = vadd.f32 %v735, %v1004
      %v1006 = vpop.f32.mrb[0].mxu0
      %v1007 = vadd.f32 %v731, %v1006
      %v1008 = vpop.f32.mrb[0].mxu0
      %v1009 = vadd.f32 %v735, %v1008
      %1010 = vmatprep.mubr.bf16.mxu0 %v679
      %1011 = vmatmul.mubr.bf16.gmra.mrb[0].mxu0 %v678
      %v1012 = vpop.f32.mrb[0].mxu0
      %v1013 = vadd.f32 %v731, %v1012
      %v1014 = vpop.f32.mrb[0].mxu0
      %v1015 = vadd.f32 %v735, %v1014
      %v1016 = vpop.f32.mrb[0].mxu0
      %v1017 = vadd.f32 %v731, %v1016
      %v1018 = vpop.f32.mrb[0].mxu0
      %v1019 = vadd.f32 %v735, %v1018
      %1020 = vmatprep.mubr.bf16.mxu0 %v681
      %1021 = vmatmul.mubr.bf16.gmra.mrb[0].mxu0 %v680
      %v1022 = vpop.f32.mrb[0].mxu0
      %v1023 = vadd.f32 %v731, %v1022
      %v1024 = vpop.f32.mrb[0].mxu0
      %v1025 = vadd.f32 %v735, %v1024
      %v1026 = vpop.f32.mrb[0].mxu0
      %v1027 = vadd.f32 %v731, %v1026
      %v1028 = vpop.f32.mrb[0].mxu0
      %v1029 = vadd.f32 %v735, %v1028
      %1030 = vmatprep.mubr.bf16.mxu0 %v683
      %1031 = vmatmul.mubr.bf16.gmra.mrb[0].mxu0 %v682
      %v1032 = vpop.f32.mrb[0].mxu0
      %v1033 = vadd.f32 %v731, %v1032
      %v1034 = vpop.f32.mrb[0].mxu0
      %v1035 = vadd.f32 %v735, %v1034
      %v1036 = vpop.f32.mrb[0].mxu0
      %v1037 = vadd.f32 %v731, %v1036
      %v1038 = vpop.f32.mrb[0].mxu0
      %v1039 = vadd.f32 %v735, %v1038
      %1040 = vmatprep.mubr.bf16.mxu0 %v685
      %1041 = vmatmul.mubr.bf16.gmra.mrb[0].mxu0 %v684
      %v1042 = vpop.f32.mrb[0].mxu0
      %v1043 = vadd.f32 %v731, %v1042
      %v1044 = vpop.f32.mrb[0].mxu0
      %v1045 = vadd.f32 %v735, %v1044
      %v1046 = vpop.f32.mrb[0].mxu0
      %v1047 = vadd.f32 %v731, %v1046
      %v1048 = vpop.f32.mrb[0].mxu0
      %v1049 = vadd.f32 %v735, %v1048
      %1050 = vmatprep.mubr.bf16.mxu0 %v687
      %1051 = vmatmul.mubr.bf16.gmra.mrb[0].mxu0 %v686
      %v1052 = vpop.f32.mrb[0].mxu0
      %v1053 = vadd.f32 %v731, %v1052
      %v1054 = vpop.f32.mrb[0].mxu0
      %v1055 = vadd.f32 %v735, %v1054
      %v1056 = vpop.f32.mrb[0].mxu0
      %v1057 = vadd.f32 %v731, %v1056
      %v1058 = vpop.f32.mrb[0].mxu0
      %v1059 = vadd.f32 %v735, %v1058
      %1060 = vmatprep.mubr.bf16.mxu0 %v689
      %1061 = vmatmul.mubr.bf16.gmra.mrb[0].mxu0 %v688
      %v1062 = vpop.f32.mrb[0].mxu0
      %v1063 = vadd.f32 %v731, %v1062
      %v1064 = vpop.f32.mrb[0].mxu0
      %v1065 = vadd.f32 %v735, %v1064
      %v1066 = vpop.f32.mrb[0].mxu0
      %v1067 = vadd.f32 %v731, %v1066
      %v1068 = vpop.f32.mrb[0].mxu0
      %v1069 = vadd.f32 %v735, %v1068
      %1070 = vmatprep.mubr.bf16.mxu0 %v691
      %1071 = vmatmul.mubr.bf16.gmra.mrb[0].mxu0 %v690
      %v1072 = vpop.f32.mrb[0].mxu0
      %v1073 = vadd.f32 %v731, %v1072
      %v1074 = vpop.f32.mrb[0].mxu0
      %v1075 = vadd.f32 %v735, %v1074
      %v1076 = vpop.f32.mrb[0].mxu0
      %v1077 = vadd.f32 %v731, %v1076
      %v1078 = vpop.f32.mrb[0].mxu0
      %v1079 = vadd.f32 %v735, %v1078
      %1080 = vmatprep.mubr.bf16.mxu0 %v693
      %1081 = vmatmul.mubr.bf16.gmra.mrb[0].mxu0 %v692
      %v1082 = vpop.f32.mrb[0].mxu0
      %v1083 = vadd.f32 %v731, %v1082
      %v1084 = vpop.f32.mrb[0].mxu0
      %v1085 = vadd.f32 %v735, %v1084
      %v1086 = vpop.f32.mrb[0].mxu0
      %v1087 = vadd.f32 %v731, %v1086
      %v1088 = vpop.f32.mrb[0].mxu0
      %v1089 = vadd.f32 %v735, %v1088
      %1090 = vdwg.mxu0
      %v1091 = vmax.f32 %v933, 0.0
      %v1092 = vmax.f32 %v935, 0.0
      %v1093 = vmax.f32 %v937, 0.0
      %v1094 = vmax.f32 %v939, 0.0
      %v1095 = vmax.f32 %v943, 0.0
      %v1096 = vmax.f32 %v945, 0.0
      %v1097 = vmax.f32 %v947, 0.0
      %v1098 = vmax.f32 %v949, 0.0
      %v1099 = vmax.f32 %v953, 0.0
      %v1100 = vmax.f32 %v955, 0.0
      %v1101 = vmax.f32 %v957, 0.0
      %v1102 = vmax.f32 %v959, 0.0
      %v1103 = vmax.f32 %v963, 0.0
      %v1104 = vmax.f32 %v965, 0.0
      %v1105 = vmax.f32 %v967, 0.0
      %v1106 = vmax.f32 %v969, 0.0
      %v1107 = vmax.f32 %v973, 0.0
      %v1108 = vmax.f32 %v975, 0.0
      %v1109 = vmax.f32 %v977, 0.0
      %v1110 = vmax.f32 %v979, 0.0
      %v1111 = vmax.f32 %v983, 0.0
      %v1112 = vmax.f32 %v985, 0.0
      %v1113 = vmax.f32 %v987, 0.0
      %v1114 = vmax.f32 %v989, 0.0
      %v1115 = vmax.f32 %v993, 0.0
      %v1116 = vmax.f32 %v995, 0.0
      %v1117 = vmax.f32 %v997, 0.0
      %v1118 = vmax.f32 %v999, 0.0
      %v1119 = vmax.f32 %v1003, 0.0
      %v1120 = vmax.f32 %v1005, 0.0
      %v1121 = vmax.f32 %v1007, 0.0
      %v1122 = vmax.f32 %v1009, 0.0
      %v1123 = vmax.f32 %v1013, 0.0
      %v1124 = vmax.f32 %v1015, 0.0
      %v1125 = vmax.f32 %v1017, 0.0
      %v1126 = vmax.f32 %v1019, 0.0
      %v1127 = vmax.f32 %v1023, 0.0
      %v1128 = vmax.f32 %v1025, 0.0
      %v1129 = vmax.f32 %v1027, 0.0
      %v1130 = vmax.f32 %v1029, 0.0
      %v1131 = vmax.f32 %v1033, 0.0
      %v1132 = vmax.f32 %v1035, 0.0
      %v1133 = vmax.f32 %v1037, 0.0
      %v1134 = vmax.f32 %v1039, 0.0
      %v1135 = vmax.f32 %v1043, 0.0
      %v1136 = vmax.f32 %v1045, 0.0
      %v1137 = vmax.f32 %v1047, 0.0
      %v1138 = vmax.f32 %v1049, 0.0
      %v1139 = vmax.f32 %v1053, 0.0
      %v1140 = vmax.f32 %v1055, 0.0
      %v1141 = vmax.f32 %v1057, 0.0
      %v1142 = vmax.f32 %v1059, 0.0
      %v1143 = vmax.f32 %v1063, 0.0
      %v1144 = vmax.f32 %v1065, 0.0
      %v1145 = vmax.f32 %v1067, 0.0
      %v1146 = vmax.f32 %v1069, 0.0
      %v1147 = vmax.f32 %v1073, 0.0
      %v1148 = vmax.f32 %v1075, 0.0
      %v1149 = vmax.f32 %v1077, 0.0
      %v1150 = vmax.f32 %v1079, 0.0
      %v1151 = vmax.f32 %v1083, 0.0
      %v1152 = vmax.f32 %v1085, 0.0
      %v1153 = vmax.f32 %v1087, 0.0
      %v1154 = vmax.f32 %v1089, 0.0
      %v1155 = vld [vmem:[%s5] sm:$0x3]
      %v1156 = vunpack.c.l.bf16 %v1155
      %v1158 = vlaneseq
      %v1159 = vshrl.u32 %v1158, 7
      %v1160 = vsub.s32 0, %v1159
      %v1161 = vrot.slane %v1156, %v1160
      %v1162 = vlaneseq
      %v1163 = vshrl.u32 %v1162, 7
      %v1164 = vsub.s32 2, %v1163
      %v1165 = vrot.slane %v1156, %v1164
      %v1168 = vlaneseq
      %v1169 = vshrl.u32 %v1168, 7
      %v1170 = vsub.s32 0, %v1169
      %v1171 = vrot.slane %v1161, %v1170
      %v1172 = vlaneseq
      %v1173 = vshrl.u32 %v1172, 7
      %v1174 = vsub.s32 0, %v1173
      %v1175 = vrot.slane %v1165, %v1174
      %v1176 = vmul.f32 %v1091, %v1171
      %v1177 = vmul.f32 %v1092, %v1175
      %v1178 = vmul.f32 %v1093, %v1171
      %v1179 = vmul.f32 %v1094, %v1175
      %v1180 = vmul.f32 %v1095, %v1171
      %v1181 = vmul.f32 %v1096, %v1175
      %v1182 = vmul.f32 %v1097, %v1171
      %v1183 = vmul.f32 %v1098, %v1175
      %v1184 = vmul.f32 %v1099, %v1171
      %v1185 = vmul.f32 %v1100, %v1175
      %v1186 = vmul.f32 %v1101, %v1171
      %v1187 = vmul.f32 %v1102, %v1175
      %v1188 = vmul.f32 %v1103, %v1171
      %v1189 = vmul.f32 %v1104, %v1175
      %v1190 = vmul.f32 %v1105, %v1171
      %v1191 = vmul.f32 %v1106, %v1175
      %v1192 = vmul.f32 %v1107, %v1171
      %v1193 = vmul.f32 %v1108, %v1175
      %v1194 = vmul.f32 %v1109, %v1171
      %v1195 = vmul.f32 %v1110, %v1175
      %v1196 = vmul.f32 %v1111, %v1171
      %v1197 = vmul.f32 %v1112, %v1175
      %v1198 = vmul.f32 %v1113, %v1171
      %v1199 = vmul.f32 %v1114, %v1175
      %v1200 = vmul.f32 %v1115, %v1171
      %v1201 = vmul.f32 %v1116, %v1175
      %v1202 = vmul.f32 %v1117, %v1171
      %v1203 = vmul.f32 %v1118, %v1175
      %v1204 = vmul.f32 %v1119, %v1171
      %v1205 = vmul.f32 %v1120, %v1175
      %v1206 = vmul.f32 %v1121, %v1171
      %v1207 = vmul.f32 %v1122, %v1175
      %v1208 = vmul.f32 %v1123, %v1171
      %v1209 = vmul.f32 %v1124, %v1175
      %v1210 = vmul.f32 %v1125, %v1171
      %v1211 = vmul.f32 %v1126, %v1175
      %v1212 = vmul.f32 %v1127, %v1171
      %v1213 = vmul.f32 %v1128, %v1175
      %v1214 = vmul.f32 %v1129, %v1171
      %v1215 = vmul.f32 %v1130, %v1175
      %v1216 = vmul.f32 %v1131, %v1171
      %v1217 = vmul.f32 %v1132, %v1175
      %v1218 = vmul.f32 %v1133, %v1171
      %v1219 = vmul.f32 %v1134, %v1175
      %v1220 = vmul.f32 %v1135, %v1171
      %v1221 = vmul.f32 %v1136, %v1175
      %v1222 = vmul.f32 %v1137, %v1171
      %v1223 = vmul.f32 %v1138, %v1175
      %v1224 = vmul.f32 %v1139, %v1171
      %v1225 = vmul.f32 %v1140, %v1175
      %v1226 = vmul.f32 %v1141, %v1171
      %v1227 = vmul.f32 %v1142, %v1175
      %v1228 = vmul.f32 %v1143, %v1171
      %v1229 = vmul.f32 %v1144, %v1175
      %v1230 = vmul.f32 %v1145, %v1171
      %v1231 = vmul.f32 %v1146, %v1175
      %v1232 = vmul.f32 %v1147, %v1171
      %v1233 = vmul.f32 %v1148, %v1175
      %v1234 = vmul.f32 %v1149, %v1171
      %v1235 = vmul.f32 %v1150, %v1175
      %v1236 = vmul.f32 %v1151, %v1171
      %v1237 = vmul.f32 %v1152, %v1175
      %v1238 = vmul.f32 %v1153, %v1171
      %v1239 = vmul.f32 %v1154, %v1175
      %v1240 = vadd.f32 %v1176, %v1177
      %1241 = vadd.xlane.f32.xlu0 %v1240
      %v1242 = vpop.xlane.xlu0 %1241
      %v1243 = vadd.f32 %v1178, %v1179
      %1244 = vadd.xlane.f32.xlu0 %v1243
      %v1245 = vpop.xlane.xlu0 %1244
      %v1246 = vadd.f32 %v1180, %v1181
      %1247 = vadd.xlane.f32.xlu0 %v1246
      %v1248 = vpop.xlane.xlu0 %1247
      %v1249 = vadd.f32 %v1182, %v1183
      %1250 = vadd.xlane.f32.xlu0 %v1249
      %v1251 = vpop.xlane.xlu0 %1250
      %v1252 = vadd.f32 %v1184, %v1185
      %1253 = vadd.xlane.f32.xlu0 %v1252
      %v1254 = vpop.xlane.xlu0 %1253
      %v1255 = vadd.f32 %v1186, %v1187
      %1256 = vadd.xlane.f32.xlu0 %v1255
      %v1257 = vpop.xlane.xlu0 %1256
      %v1258 = vadd.f32 %v1188, %v1189
      %1259 = vadd.xlane.f32.xlu0 %v1258
      %v1260 = vpop.xlane.xlu0 %1259
      %v1261 = vadd.f32 %v1190, %v1191
      %1262 = vadd.xlane.f32.xlu0 %v1261
      %v1263 = vpop.xlane.xlu0 %1262
      %v1264 = vadd.f32 %v1192, %v1193
      %1265 = vadd.xlane.f32.xlu0 %v1264
      %v1266 = vpop.xlane.xlu0 %1265
      %v1267 = vadd.f32 %v1194, %v1195
      %1268 = vadd.xlane.f32.xlu0 %v1267
      %v1269 = vpop.xlane.xlu0 %1268
      %v1270 = vadd.f32 %v1196, %v1197
      %1271 = vadd.xlane.f32.xlu0 %v1270
      %v1272 = vpop.xlane.xlu0 %1271
      %v1273 = vadd.f32 %v1198, %v1199
      %1274 = vadd.xlane.f32.xlu0 %v1273
      %v1275 = vpop.xlane.xlu0 %1274
      %v1276 = vadd.f32 %v1200, %v1201
      %1277 = vadd.xlane.f32.xlu0 %v1276
      %v1278 = vpop.xlane.xlu0 %1277
      %v1279 = vadd.f32 %v1202, %v1203
      %1280 = vadd.xlane.f32.xlu0 %v1279
      %v1281 = vpop.xlane.xlu0 %1280
      %v1282 = vadd.f32 %v1204, %v1205
      %1283 = vadd.xlane.f32.xlu0 %v1282
      %v1284 = vpop.xlane.xlu0 %1283
      %v1285 = vadd.f32 %v1206, %v1207
      %1286 = vadd.xlane.f32.xlu0 %v1285
      %v1287 = vpop.xlane.xlu0 %1286
      %v1288 = vadd.f32 %v1208, %v1209
      %1289 = vadd.xlane.f32.xlu0 %v1288
      %v1290 = vpop.xlane.xlu0 %1289
      %v1291 = vadd.f32 %v1210, %v1211
      %1292 = vadd.xlane.f32.xlu0 %v1291
      %v1293 = vpop.xlane.xlu0 %1292
      %v1294 = vadd.f32 %v1212, %v1213
      %1295 = vadd.xlane.f32.xlu0 %v1294
      %v1296 = vpop.xlane.xlu0 %1295
      %v1297 = vadd.f32 %v1214, %v1215
      %1298 = vadd.xlane.f32.xlu0 %v1297
      %v1299 = vpop.xlane.xlu0 %1298
      %v1300 = vadd.f32 %v1216, %v1217
      %1301 = vadd.xlane.f32.xlu0 %v1300
      %v1302 = vpop.xlane.xlu0 %1301
      %v1303 = vadd.f32 %v1218, %v1219
      %1304 = vadd.xlane.f32.xlu0 %v1303
      %v1305 = vpop.xlane.xlu0 %1304
      %v1306 = vadd.f32 %v1220, %v1221
      %1307 = vadd.xlane.f32.xlu0 %v1306
      %v1308 = vpop.xlane.xlu0 %1307
      %v1309 = vadd.f32 %v1222, %v1223
      %1310 = vadd.xlane.f32.xlu0 %v1309
      %v1311 = vpop.xlane.xlu0 %1310
      %v1312 = vadd.f32 %v1224, %v1225
      %1313 = vadd.xlane.f32.xlu0 %v1312
      %v1314 = vpop.xlane.xlu0 %1313
      %v1315 = vadd.f32 %v1226, %v1227
      %1316 = vadd.xlane.f32.xlu0 %v1315
      %v1317 = vpop.xlane.xlu0 %1316
      %v1318 = vadd.f32 %v1228, %v1229
      %1319 = vadd.xlane.f32.xlu0 %v1318
      %v1320 = vpop.xlane.xlu0 %1319
      %v1321 = vadd.f32 %v1230, %v1231
      %1322 = vadd.xlane.f32.xlu0 %v1321
      %v1323 = vpop.xlane.xlu0 %1322
      %v1324 = vadd.f32 %v1232, %v1233
      %1325 = vadd.xlane.f32.xlu0 %v1324
      %v1326 = vpop.xlane.xlu0 %1325
      %v1327 = vadd.f32 %v1234, %v1235
      %1328 = vadd.xlane.f32.xlu0 %v1327
      %v1329 = vpop.xlane.xlu0 %1328
      %v1330 = vadd.f32 %v1236, %v1237
      %1331 = vadd.xlane.f32.xlu0 %v1330
      %v1332 = vpop.xlane.xlu0 %1331
      %v1333 = vadd.f32 %v1238, %v1239
      %1334 = vadd.xlane.f32.xlu0 %v1333
      %v1335 = vpop.xlane.xlu0 %1334
      %s1336 = sld [smem:[#allocation2]]
      %v1337 = vstv %s1336
      %v1338 = vadd.f32 %v1242, %v1337
      %v1339 = vadd.f32 %v1245, %v1337
      %v1340 = vadd.f32 %v1248, %v1337
      %v1341 = vadd.f32 %v1251, %v1337
      %v1342 = vadd.f32 %v1254, %v1337
      %v1343 = vadd.f32 %v1257, %v1337
      %v1344 = vadd.f32 %v1260, %v1337
      %v1345 = vadd.f32 %v1263, %v1337
      %v1346 = vadd.f32 %v1266, %v1337
      %v1347 = vadd.f32 %v1269, %v1337
      %v1348 = vadd.f32 %v1272, %v1337
      %v1349 = vadd.f32 %v1275, %v1337
      %v1350 = vadd.f32 %v1278, %v1337
      %v1351 = vadd.f32 %v1281, %v1337
      %v1352 = vadd.f32 %v1284, %v1337
      %v1353 = vadd.f32 %v1287, %v1337
      %v1354 = vadd.f32 %v1290, %v1337
      %v1355 = vadd.f32 %v1293, %v1337
      %v1356 = vadd.f32 %v1296, %v1337
      %v1357 = vadd.f32 %v1299, %v1337
      %v1358 = vadd.f32 %v1302, %v1337
      %v1359 = vadd.f32 %v1305, %v1337
      %v1360 = vadd.f32 %v1308, %v1337
      %v1361 = vadd.f32 %v1311, %v1337
      %v1362 = vadd.f32 %v1314, %v1337
      %v1363 = vadd.f32 %v1317, %v1337
      %v1364 = vadd.f32 %v1320, %v1337
      %v1365 = vadd.f32 %v1323, %v1337
      %v1366 = vadd.f32 %v1326, %v1337
      %v1367 = vadd.f32 %v1329, %v1337
      %v1368 = vadd.f32 %v1332, %v1337
      %v1369 = vadd.f32 %v1335, %v1337
      %vm1370 = vcmask 7168
      %1371 = vst.msk [vmem:[%s281] sm:$0xff] %vm1370, %v1338
      %1372 = vst.msk [vmem:[%s281 + $0x8] sm:$0xff] %vm1370, %v1339
      %1373 = vst.msk [vmem:[%s281 + $0x10] sm:$0xff] %vm1370, %v1340
      %1374 = vst.msk [vmem:[%s281 + $0x18] sm:$0xff] %vm1370, %v1341
      %1375 = vst.msk [vmem:[%s281 + $0x20] sm:$0xff] %vm1370, %v1342
      %1376 = vst.msk [vmem:[%s281 + $0x28] sm:$0xff] %vm1370, %v1343
      %1377 = vst.msk [vmem:[%s281 + $0x30] sm:$0xff] %vm1370, %v1344
      %1378 = vst.msk [vmem:[%s281 + $0x38] sm:$0xff] %vm1370, %v1345
      %1379 = vst.msk [vmem:[%s281 + $0x40] sm:$0xff] %vm1370, %v1346
      %1380 = vst.msk [vmem:[%s281 + $0x48] sm:$0xff] %vm1370, %v1347
      %1381 = vst.msk [vmem:[%s281 + $0x50] sm:$0xff] %vm1370, %v1348
      %1382 = vst.msk [vmem:[%s281 + $0x58] sm:$0xff] %vm1370, %v1349
      %1383 = vst.msk [vmem:[%s281 + $0x60] sm:$0xff] %vm1370, %v1350
      %1384 = vst.msk [vmem:[%s281 + $0x68] sm:$0xff] %vm1370, %v1351
      %1385 = vst.msk [vmem:[%s281 + $0x70] sm:$0xff] %vm1370, %v1352
      %1386 = vst.msk [vmem:[%s281 + $0x78] sm:$0xff] %vm1370, %v1353
      %1387 = vst.msk [vmem:[%s281 + $0x80] sm:$0xff] %vm1370, %v1354
      %1388 = vst.msk [vmem:[%s281 + $0x88] sm:$0xff] %vm1370, %v1355
      %1389 = vst.msk [vmem:[%s281 + $0x90] sm:$0xff] %vm1370, %v1356
      %1390 = vst.msk [vmem:[%s281 + $0x98] sm:$0xff] %vm1370, %v1357
      %1391 = vst.msk [vmem:[%s281 + $0xa0] sm:$0xff] %vm1370, %v1358
      %1392 = vst.msk [vmem:[%s281 + $0xa8] sm:$0xff] %vm1370, %v1359
      %1393 = vst.msk [vmem:[%s281 + $0xb0] sm:$0xff] %vm1370, %v1360
      %1394 = vst.msk [vmem:[%s281 + $0xb8] sm:$0xff] %vm1370, %v1361
      %1395 = vst.msk [vmem:[%s281 + $0xc0] sm:$0xff] %vm1370, %v1362
      %1396 = vst.msk [vmem:[%s281 + $0xc8] sm:$0xff] %vm1370, %v1363
      %1397 = vst.msk [vmem:[%s281 + $0xd0] sm:$0xff] %vm1370, %v1364
      %1398 = vst.msk [vmem:[%s281 + $0xd8] sm:$0xff] %vm1370, %v1365
      %1399 = vst.msk [vmem:[%s281 + $0xe0] sm:$0xff] %vm1370, %v1366
      %1400 = vst.msk [vmem:[%s281 + $0xe8] sm:$0xff] %vm1370, %v1367
      %1401 = vst.msk [vmem:[%s281 + $0xf0] sm:$0xff] %vm1370, %v1368
      %1402 = vst.msk [vmem:[%s281 + $0xf8] sm:$0xff] %vm1370, %v1369
      %s1403 = smul.u32 32, %s19
      %p1404 = scmp.lt.s32.totalorder %s1403, 63
      %s1405 = scalar_select %p1404, %s1403, 63
      %s1406 = smul.addr %s1405, 8
      %s1407 = scalar_lea.vmem %s7, %s1406
      // Predicated region
      $region49: #{tpu_custom_call.1} parent=47 // pred_check
        %p1408 = pneg %p189
      $region50: #{tpu_custom_call.1} parent=47 // pred_check_branch
        %1410 = sbr.rel (%p1408) target = $region52
      $region51: #{tpu_custom_call.1} parent=47 // pred_region
        %s1411 = smul.u32 32, %s19
      $region52: #{tpu_custom_call.1} parent=47 // pred_fallthru
        _
    $region48: #{tpu_custom_call.1} parent=5 // pred_fallthru
      _
    %p1412 = scmp.le.s32.totalorder 2, %s14
    // Predicated region
    $region53: #{tpu_custom_call.1} parent=5 // pred_check
      %p1413 = pneg %p1412
    $region54: #{tpu_custom_call.1} parent=5 // pred_check_branch
      %1415 = sbr.rel (%p1413) target = $region56
    $region55: #{tpu_custom_call.1} parent=5 // pred_region
      %s1416 = ssub.s32 %s14, 2
      // Predicated region
      $region57: #{tpu_custom_call.1} parent=55 // pred_check
        %p1417 = pneg %p195
      $region58: #{tpu_custom_call.1} parent=55 // pred_check_branch
        %1419 = sbr.rel (%p1417) target = $region60
      $region59: #{tpu_custom_call.1} parent=55 // pred_region
        %s1420 = smul.u32 32, %s20
        %p1421 = scmp.lt.s32.totalorder %s1420, 63
        %s1422 = scalar_select %p1421, %s1420, 63
        %s1423 = smul.addr %s1422, 8
        %s1424 = scalar_lea.vmem %s7, %s1423
      $region60: #{tpu_custom_call.1} parent=55 // pred_fallthru
        _
    $region56: #{tpu_custom_call.1} parent=5 // pred_fallthru
      _
  $region6: #{tpu_custom_call.1} parent=0 // loop_footer
    %s18 = sadd.s32 1, %s14
  $region7: #{tpu_custom_call.1} parent=0 // loop_footer_branch
    %13 = sbr.rel target = $region3
  $region8: #{tpu_custom_call.1} parent=0 // loop_exit
    _

</llo_original>
